<compile_context>
chip_gen: v7x
topology: tpu7x:2x2x1
jax: 0.10.0
libtpu: 0.0.40
codegen_flags: <defaults>
</compile_context>

<pallas_src>
import functools

import numpy as np
import jax
import jax.numpy as jnp
from jax import lax
from jax.experimental import pallas as pl
from jax.experimental.pallas import tpu as pltpu


def _round_up(v, m):
    return (v + m - 1) // m * m


def _make_kernel(tap_offsets, tile_oh, Wp, OW, stride, has_relu):
    tile_rows = tile_oh * Wp

    def kernel(x_ref, w_ref, ss_ref, o_ref):
        # x_ref:  (1, 1, slab_flat, Kt) bf16 : input row slab (halo included)
        # w_ref:  (n_taps, Kt, tn)      bf16 : weights, one (Kt, tn) matrix per row tap
        # ss_ref: (2, tn)               f32  : [0]=BN scale, [1]=bias/BN shift
        # o_ref:  (1, tile_oh, OW, tn)  out_dtype
        acc = None
        for t, off in enumerate(tap_offsets):           # static unroll -> n_taps MXU dots
            if stride == 1:
                sub = x_ref[0, 0, pl.ds(off, tile_rows), :]
            else:
                # TODO(synk): strided tap reads (stride > 1) are untested on hardware.
                sub = x_ref[0, 0, pl.ds(off, tile_rows, stride), :]
            part = jnp.dot(sub, w_ref[t], preferred_element_type=jnp.float32)
            acc = part if acc is None else acc + part
        acc = acc * ss_ref[0:1, :] + ss_ref[1:2, :]      # fused bias + eval-mode BN
        if has_relu:
            acc = jnp.maximum(acc, 0.0)
        # drop the (Wp - OW) invalid over-wide columns before the store (NHWC output)
        acc = acc.reshape(tile_oh, Wp, acc.shape[-1])[:, :OW, :]
        o_ref[0] = acc.astype(o_ref.dtype)

    return kernel


def conv_bn_relu_pallas(
    x,               # (N, C, H, W) float32, NCHW (PyTorch convention)
    weight,          # (OC, C, KH, KW)
    bias,            # (OC,) or None
    gamma,           # (OC,) BN weight or None
    beta,            # (OC,) BN bias or None
    running_mean,    # (OC,) or None
    running_var,     # (OC,) or None
    *,
    stride=1,
    pad=0,
    has_bn=True,
    has_relu=True,
    has_bias=True,
    eps=1e-5,
    compute_dtype=jnp.bfloat16,
    out_dtype=jnp.bfloat16,
    oc_tile=None,
    out_layout="NCHW",   # "NHWC" keeps the kernel-native layout (drops the final transpose)
):
    N, C, H, W = x.shape
    OC, Cw, KH, KW = weight.shape
    assert Cw == C, "groups != 1 not supported"   # TODO(synk): grouped convolution

    Hp, Wp = H + 2 * pad, W + 2 * pad
    OH = (Hp - KH) // stride + 1
    OW = (Wp - KW) // stride + 1
    assert OH > 0 and OW > 0

    # ---- per-channel scale / shift (conv bias + eval-mode BN), kept in f32 -------------
    # TODO(synk): BatchNorm2d training mode (batch statistics) not implemented.
    if has_bn:
        scale = (gamma / jnp.sqrt(running_var + eps)).astype(jnp.float32)
        shift = (beta - running_mean * scale).astype(jnp.float32)
    else:
        scale = jnp.ones((OC,), jnp.float32)
        shift = jnp.zeros((OC,), jnp.float32)
    if has_bias:
        shift = shift + bias.astype(jnp.float32) * scale

    # ---- output-channel tiling (lane-dense, multiple of 128; 256 matches v6e/v7x MXU) --
    OCp = _round_up(OC, 128)
    tn = min(OCp, 256) if oc_tile is None else min(OCp, _round_up(oc_tile, 128))
    while OCp % tn:
        tn -= 128
    n_oc = OCp // tn

    # ---- tap layout: pack KW into the lane dim when C is below MXU depth ---------------
    use_kw_pack = (KW > 1) and (C < 128)
    w_f32 = jnp.transpose(weight.astype(jnp.float32), (2, 3, 1, 0))      # (KH, KW, C, OC)
    if use_kw_pack:
        n_taps, Kt = KH, KW * C
        tap_offsets = [kh * Wp for kh in range(KH)]
        w_taps = w_f32.reshape(KH, KW * C, OC)
    else:
        n_taps, Kt = KH * KW, C
        tap_offsets = [kh * Wp + kw for kh in range(KH) for kw in range(KW)]
        w_taps = w_f32.reshape(KH * KW, C, OC)
    w_taps = jnp.pad(w_taps, ((0, 0), (0, 0), (0, OCp - OC))).astype(compute_dtype)
    ss = jnp.stack([jnp.pad(scale, (0, OCp - OC)),
                    jnp.pad(shift, (0, OCp - OC))], axis=0)              # (2, OCp) f32

    # ---- row-tile size selection under a VMEM budget -----------------------------------
    out_bytes = np.dtype(out_dtype).itemsize
    slab_lane = _round_up(Kt, 128)
    halo = (KH - 1) * Wp + (0 if use_kw_pack else (KW - 1))

    def est_vmem(t_oh):
        t_rows = t_oh * Wp
        s_flat = halo + (t_rows - 1) * stride + 1
        b = 2 * _round_up(s_flat, 16) * slab_lane * 2            # x slab (2 buf, bf16)
        b += 2 * n_taps * _round_up(Kt, 16) * tn * 2             # weights (2 buf, bf16)
        b += 2 * t_oh * _round_up(OW, 8) * tn * out_bytes        # out tile (2 buf)
        b += 2 * _round_up(t_rows, 8) * tn * 4                   # f32 acc + partial
        b += 2 * _round_up(t_rows, 16) * slab_lane * 2           # bf16 tap temporaries
        return b + (2 << 20)

    vmem_cap = 64 << 20
    try:
        vmem_cap = int(pltpu.get_tpu_info().vmem_capacity_bytes)
    except Exception:
        pass
    budget = int(0.55 * vmem_cap)
    target_rows = 2048 if vmem_cap > (64 << 20) else 1024
    tile_oh = max(1, min(OH, target_rows // max(Wp, 1)))
    while tile_oh > 1 and est_vmem(tile_oh) > budget:
        tile_oh -= 1
    n_row = -(-OH // tile_oh)
    if N * n_row * n_oc < 2 and OH >= 2:       # >= 2 grid steps so megacore can shard
        tile_oh = (OH + 1) // 2
        n_row = -(-OH // tile_oh)
    OHp = n_row * tile_oh
    tile_rows = tile_oh * Wp
    slab_flat = halo + (tile_rows - 1) * stride + 1
    vmem_limit = int(min(max(int(est_vmem(tile_oh) * 1.25), 32 << 20), int(0.8 * vmem_cap)))

    # ---- input layout: NHWC, flat spatial, optional KW lane-pack, halo-duplicated slabs -
    x_nhwc = jnp.transpose(x, (0, 2, 3, 1))
    if pad > 0:
        x_nhwc = jnp.pad(x_nhwc, ((0, 0), (pad, pad), (pad, pad), (0, 0)))
    x_flat = x_nhwc.reshape(N, Hp * Wp, C).astype(compute_dtype)

    flat_need = (n_row - 1) * tile_oh * stride * Wp + slab_flat
    need_len = flat_need + (KW - 1 if use_kw_pack else 0)
    if need_len > Hp * Wp:
        x_flat = jnp.pad(x_flat, ((0, 0), (0, need_len - Hp * Wp), (0, 0)))
    if use_kw_pack:
        base = jnp.concatenate(
            [x_flat[:, kw:kw + flat_need, :] for kw in range(KW)], axis=-1)  # (N, flat, KW*C)
    else:
        base = x_flat[:, :flat_need, :]
    slabs = jnp.stack(
        [base[:, i * tile_oh * stride * Wp: i * tile_oh * stride * Wp + slab_flat, :]
         for i in range(n_row)], axis=1)                     # (N, n_row, slab_flat, Kt)

    kernel = _make_kernel(tap_offsets, tile_oh, Wp, OW, stride, has_relu)

    out = pl.pallas_call(
        kernel,
        out_shape=jax.ShapeDtypeStruct((N, OHp, OW, OCp), out_dtype),
        grid_spec=pltpu.PrefetchScalarGridSpec(
            num_scalar_prefetch=0,
            grid=(N, n_row, n_oc),      # OC innermost: the x slab is not refetched
            in_specs=[
                pl.BlockSpec((1, 1, slab_flat, Kt), lambda n, i, j: (n, i, 0, 0)),
                pl.BlockSpec((n_taps, Kt, tn), lambda n, i, j: (0, 0, j)),
                pl.BlockSpec((2, tn), lambda n, i, j: (0, j)),
            ],
            out_specs=pl.BlockSpec((1, tile_oh, OW, tn), lambda n, i, j: (n, i, 0, j)),
        ),
        compiler_params=pltpu.CompilerParams(
            dimension_semantics=("parallel", "parallel", "parallel"),
            vmem_limit_bytes=vmem_limit,
        ),
    )(slabs, w_taps, ss)

    out = out[:, :OH, :, :OC]                 # drop padded rows / channels
    if out_layout == "NHWC":
        return out
    # single boundary pass back to the PyTorch NCHW layout (slice+transpose+cast fuse)
    return jnp.transpose(out, (0, 3, 1, 2)).astype(jnp.float32)


def _reference(x, weight, bias, gamma, beta, rmean, rvar, *, stride=1, pad=0, eps=1e-5):
    # pure-JAX f32 reference (NCHW conv, bias, eval-mode BN, ReLU)
    y = lax.conv_general_dilated(
        x, weight, window_strides=(stride, stride),
        padding=[(pad, pad), (pad, pad)],
        dimension_numbers=("NCHW", "OIHW", "NCHW"),
    )
    y = y + bias[None, :, None, None]
    scale = gamma / jnp.sqrt(rvar + eps)
    shift = beta - rmean * scale
    return jnp.maximum(y * scale[None, :, None, None] + shift[None, :, None, None], 0.0)


if __name__ == "__main__":
    key = jax.random.PRNGKey(0)
    kx, kw_, kb, kg, kbe, km, kv = jax.random.split(key, 7)

    N, C, H, W = 2, 4, 16, 16
    OC, KH, KW = 8, 3, 3

    x = jax.random.normal(kx, (N, C, H, W), dtype=jnp.float32)
    weight = jax.random.normal(kw_, (OC, C, KH, KW), dtype=jnp.float32) * 0.1
    bias = jax.random.normal(kb, (OC,), dtype=jnp.float32) * 0.1
    gamma = jax.random.normal(kg, (OC,), dtype=jnp.float32) * 0.1 + 1.0
    beta = jax.random.normal(kbe, (OC,), dtype=jnp.float32) * 0.1
    running_mean = jax.random.normal(km, (OC,), dtype=jnp.float32) * 0.1
    running_var = jax.nn.softplus(jax.random.normal(kv, (OC,), dtype=jnp.float32)) + 0.5

    for (s, p) in ((1, 0), (1, 1)):           # pad=1 exercises the halo / non-8-aligned path
        run = jax.jit(functools.partial(
            conv_bn_relu_pallas, stride=s, pad=p,
            has_bn=True, has_relu=True, has_bias=True))
        out = jax.block_until_ready(
            run(x, weight, bias, gamma, beta, running_mean, running_var))
        ref = _reference(x, weight, bias, gamma, beta, running_mean, running_var,
                         stride=s, pad=p)
        assert out.shape == ref.shape, (out.shape, ref.shape)
        err = float(jnp.max(jnp.abs(out - ref)))
        assert jnp.allclose(out, ref, atol=5e-2, rtol=5e-2), \
            f"mismatch vs reference (stride={s}, pad={p}): {err}"
    print("KERNEL_OK")
</pallas_src>

<mosaic_0001>
module attributes {stable_mosaic.version = 11 : i64} {
  func.func @kernel(%arg0: i32, %arg1: i32, %arg2: i32, %arg3: memref<1x1x256x12xbf16, #tpu.memory_space<vmem>>, %arg4: memref<3x12x128xbf16, #tpu.memory_space<vmem>>, %arg5: memref<2x128xf32, #tpu.memory_space<vmem>>, %arg6: memref<1x14x14x128xbf16, #tpu.memory_space<vmem>>) attributes {dimension_semantics = [#tpu.dimension_semantics<parallel>, #tpu.dimension_semantics<parallel>, #tpu.dimension_semantics<parallel>], iteration_bounds = array<i64: 2, 1, 1>, scalar_prefetch = 0 : i64, scratch_operands = 0 : i64, tpu.core_type = #tpu.core_type<tc>, window_params = [{transform_indices = @transform_0, window_bounds = array<i64: 1, 1, 256, 12>}, {transform_indices = @transform_1, window_bounds = array<i64: 3, 12, 128>}, {transform_indices = @transform_2, window_bounds = array<i64: 2, 128>}, {transform_indices = @transform_3, window_bounds = array<i64: 1, 14, 14, 128>}]} {
    %c0 = arith.constant 0 : index
    %c0_0 = arith.constant 0 : index
    %c0_1 = arith.constant 0 : index
    %c0_2 = arith.constant 0 : index
    %0 = vector.load %arg3[%c0, %c0_0, %c0_1, %c0_2] : memref<1x1x256x12xbf16, #tpu.memory_space<vmem>>, vector<1x1x224x12xbf16>
    %1 = vector.shape_cast %0 : vector<1x1x224x12xbf16> to vector<224x12xbf16>
    %c0_3 = arith.constant 0 : index
    %c0_4 = arith.constant 0 : index
    %c0_5 = arith.constant 0 : index
    %2 = vector.load %arg4[%c0_3, %c0_4, %c0_5] : memref<3x12x128xbf16, #tpu.memory_space<vmem>>, vector<1x12x128xbf16>
    %3 = vector.shape_cast %2 : vector<1x12x128xbf16> to vector<12x128xbf16>
    %cst = arith.constant dense<0.000000e+00> : vector<224x128xf32>
    %4 = tpu.matmul %1, %3, %cst {dimension_numbers = #tpu.dot_dimension_numbers<[1], [0], [0], [1], [0, 0, 1, 1], [], []>} : vector<224x12xbf16>, vector<12x128xbf16>, vector<224x128xf32> -> vector<224x128xf32>
    %c0_6 = arith.constant 0 : index
    %c0_7 = arith.constant 0 : index
    %c16 = arith.constant 16 : index
    %c0_8 = arith.constant 0 : index
    %5 = vector.load %arg3[%c0_6, %c0_7, %c16, %c0_8] : memref<1x1x256x12xbf16, #tpu.memory_space<vmem>>, vector<1x1x224x12xbf16>
    %6 = vector.shape_cast %5 : vector<1x1x224x12xbf16> to vector<224x12xbf16>
    %c1 = arith.constant 1 : index
    %c0_9 = arith.constant 0 : index
    %c0_10 = arith.constant 0 : index
    %7 = vector.load %arg4[%c1, %c0_9, %c0_10] : memref<3x12x128xbf16, #tpu.memory_space<vmem>>, vector<1x12x128xbf16>
    %8 = vector.shape_cast %7 : vector<1x12x128xbf16> to vector<12x128xbf16>
    %cst_11 = arith.constant dense<0.000000e+00> : vector<224x128xf32>
    %9 = tpu.matmul %6, %8, %cst_11 {dimension_numbers = #tpu.dot_dimension_numbers<[1], [0], [0], [1], [0, 0, 1, 1], [], []>} : vector<224x12xbf16>, vector<12x128xbf16>, vector<224x128xf32> -> vector<224x128xf32>
    %10 = arith.addf %4, %9 : vector<224x128xf32>
    %c0_12 = arith.constant 0 : index
    %c0_13 = arith.constant 0 : index
    %c32 = arith.constant 32 : index
    %c0_14 = arith.constant 0 : index
    %11 = vector.load %arg3[%c0_12, %c0_13, %c32, %c0_14] : memref<1x1x256x12xbf16, #tpu.memory_space<vmem>>, vector<1x1x224x12xbf16>
    %12 = vector.shape_cast %11 : vector<1x1x224x12xbf16> to vector<224x12xbf16>
    %c2 = arith.constant 2 : index
    %c0_15 = arith.constant 0 : index
    %c0_16 = arith.constant 0 : index
    %13 = vector.load %arg4[%c2, %c0_15, %c0_16] : memref<3x12x128xbf16, #tpu.memory_space<vmem>>, vector<1x12x128xbf16>
    %14 = vector.shape_cast %13 : vector<1x12x128xbf16> to vector<12x128xbf16>
    %cst_17 = arith.constant dense<0.000000e+00> : vector<224x128xf32>
    %15 = tpu.matmul %12, %14, %cst_17 {dimension_numbers = #tpu.dot_dimension_numbers<[1], [0], [0], [1], [0, 0, 1, 1], [], []>} : vector<224x12xbf16>, vector<12x128xbf16>, vector<224x128xf32> -> vector<224x128xf32>
    %16 = arith.addf %10, %15 : vector<224x128xf32>
    %c0_18 = arith.constant 0 : index
    %c0_19 = arith.constant 0 : index
    %17 = vector.load %arg5[%c0_18, %c0_19] : memref<2x128xf32, #tpu.memory_space<vmem>>, vector<1x128xf32>
    %18 = vector.broadcast %17 : vector<1x128xf32> to vector<224x128xf32>
    %19 = arith.mulf %16, %18 : vector<224x128xf32>
    %c1_20 = arith.constant 1 : index
    %c0_21 = arith.constant 0 : index
    %20 = vector.load %arg5[%c1_20, %c0_21] : memref<2x128xf32, #tpu.memory_space<vmem>>, vector<1x128xf32>
    %21 = vector.broadcast %20 : vector<1x128xf32> to vector<224x128xf32>
    %22 = arith.addf %19, %21 : vector<224x128xf32>
    %cst_22 = arith.constant 0.000000e+00 : f32
    %23 = vector.broadcast %cst_22 : f32 to vector<224x128xf32>
    %24 = arith.maximumf %22, %23 : vector<224x128xf32>
    %25 = vector.shape_cast %24 : vector<224x128xf32> to vector<14x16x128xf32>
    %26 = vector.extract_strided_slice %25 {offsets = [0, 0, 0], sizes = [14, 14, 128], strides = [1, 1, 1]} : vector<14x16x128xf32> to vector<14x14x128xf32>
    %27 = arith.truncf %26 : vector<14x14x128xf32> to vector<14x14x128xbf16>
    %c0_23 = arith.constant 0 : index
    %c0_24 = arith.constant 0 : index
    %c0_25 = arith.constant 0 : index
    %c0_26 = arith.constant 0 : index
    %28 = vector.load %arg6[%c0_23, %c0_24, %c0_25, %c0_26] : memref<1x14x14x128xbf16, #tpu.memory_space<vmem>>, vector<1x14x14x128xbf16>
    %29 = vector.shape_cast %28 : vector<1x14x14x128xbf16> to vector<14x14x128xbf16>
    %30 = vector.shape_cast %27 : vector<14x14x128xbf16> to vector<1x14x14x128xbf16>
    tpu.vector_store %arg6[%c0_23, %c0_24, %c0_25, %c0_26], %30 {strides = array<i32>} : memref<1x14x14x128xbf16, #tpu.memory_space<vmem>>, vector<1x14x14x128xbf16>,
    return
  }
  func.func @transform_0(%arg0: i32, %arg1: i32, %arg2: i32) -> (i32, i32, i32, i32) {
    %c0_i32 = arith.constant 0 : i32
    %c0_i32_0 = arith.constant 0 : i32
    %c0_i32_1 = arith.constant 0 : i32
    return %arg0, %arg1, %c0_i32, %c0_i32_0 : i32, i32, i32, i32
  }
  func.func @transform_1(%arg0: i32, %arg1: i32, %arg2: i32) -> (i32, i32, i32) {
    %c0_i32 = arith.constant 0 : i32
    %c0_i32_0 = arith.constant 0 : i32
    %c0_i32_1 = arith.constant 0 : i32
    return %c0_i32, %c0_i32_0, %arg2 : i32, i32, i32
  }
  func.func @transform_2(%arg0: i32, %arg1: i32, %arg2: i32) -> (i32, i32) {
    %c0_i32 = arith.constant 0 : i32
    %c0_i32_0 = arith.constant 0 : i32
    return %c0_i32, %arg2 : i32, i32
  }
  func.func @transform_3(%arg0: i32, %arg1: i32, %arg2: i32) -> (i32, i32, i32, i32) {
    %c0_i32 = arith.constant 0 : i32
    %c0_i32_0 = arith.constant 0 : i32
    return %arg0, %arg1, %c0_i32, %arg2 : i32, i32, i32, i32
  }
}

</mosaic_0001>

<llo_original>
// kernel: conv_bn_relu_pallas.1
$region0: #{conv_bn_relu_pallas.1}
  #allocation0 [shape = 'u32[]', space=smem, size = 0x4, offset = 0x4, fixed_abs, tag = 'smem constant byte address 0x4 - core index']
  #allocation1 [shape = 'u32[144,128]{1,0:T(1,128)}', space=vmem, size = 0x12000, scoped, tag = 'internal scratch']
  %s0 = inlined_call_operand.vmem [shape: bf16[2,1,256,12], index: 0, kind: input, shape index: {}]
  %s1 = inlined_call_operand.vmem [shape: bf16[3,12,128], index: 1, kind: input, shape index: {}]
  %s2 = inlined_call_operand.vmem [shape: f32[2,128], index: 2, kind: input, shape index: {}]
  %s3 = inlined_call_operand.vmem [shape: bf16[2,14,14,128], index: 3, kind: output, shape index: {}]
  %s4 = sld [smem:[#allocation0]]
  $region45: #{conv_bn_relu_pallas.1} parent=0
    _
  %s6 = ssub.s32 1, %s4
  %s7 = scalar_select 0, %s6, %s4
  loop: start=0, step=1, limit=4
  $region2: #{conv_bn_relu_pallas.1} parent=0 // loop_pre_header
    _
  $region3: #{conv_bn_relu_pallas.1} parent=0 // loop_header
    %s9 = sphi 0, %s13
    %p10 = scmp.ge.s32.totalorder %s9, 4
    %s16 = sphi 0, %s35
    %s17 = sphi 0, %s31
    %s18 = sphi 0, %s27
    %s19 = sphi 0, %s16
    %s20 = sphi 0, %s17
    %s21 = sphi 0, %s18
    %s22 = sphi 0, %s19
    %s23 = sphi 0, %s20
    %s24 = sphi 0, %s21
    %s40 = sphi 0, %s42
    %s43 = sphi 0, %s40
    %s44 = sphi 0, %s43
    %s60 = sphi 0, %s44
    %s66 = sphi 0, %s68
    %s69 = sphi 0, %s66
    %s70 = sphi 0, %s69
    %s86 = sphi 0, %s70
    %s92 = sphi 0, %s94
    %s95 = sphi 0, %s92
    %s96 = sphi 0, %s95
    %s112 = sphi 0, %s96
    %s122 = sphi 0, %s124
    %s125 = sphi 0, %s122
    %s126 = sphi 0, %s125
    %s142 = sphi 0, %s126
  $region4: #{conv_bn_relu_pallas.1} parent=0 // loop_header_branch
    %12 = sbr.rel (%p10) target = $region8
  $region5: #{conv_bn_relu_pallas.1} parent=0 // loop_body
    %s14 = ssub.s32 %s9, 1
    %s15 = ssub.s32 %s9, 2
    %s25 = sadd.s32 1, %s18
    %p26 = scmp.ge.s32.totalorder %s25, 1
    %s27 = scalar_select %p26, 0, %s25
    %s28 = sadd.s32 1, %s17
    %s29 = scalar_select %p26, %s28, %s17
    %p30 = scmp.ge.s32.totalorder %s29, 1
    %s31 = scalar_select %p30, 0, %s29
    %s32 = sadd.s32 1, %s16
    %s33 = scalar_select %p30, %s32, %s16
    %p34 = scmp.ge.s32.totalorder %s33, 2
    %s35 = scalar_select %p34, 0, %s33
    %s36 = ssub.s32 %s16, %s35
    %s37 = ssub.s32 %s17, %s31
    %s38 = sor.u32 %s36, %s37
    %p39 = scmp.eq.s32.totalorder %s38, 0
    %s41 = sadd.s32 %s40, 1
    %s42 = scalar_select %p39, %s40, %s41
    %p45 = pneg %p39
    %p46 = scmp.eq.s32.totalorder %s9, 1
    %p47 = por %p45, %p46
    %p48 = scmp.ne.s32.totalorder %s40, %s43
    %p49 = scmp.eq.s32.totalorder %s9, 0
    %p50 = por %p48, %p49
    %p51 = scmp.ne.s32.totalorder %s40, %s43
    %p52 = scmp.eq.s32.totalorder %s14, 1
    %p53 = por %p51, %p52
    %p54 = scmp.ne.s32.totalorder %s43, %s44
    %p55 = scmp.eq.s32.totalorder %s14, 0
    %p56 = por %p54, %p55
    %p57 = scmp.ne.s32.totalorder %s43, %s44
    %p58 = scmp.eq.s32.totalorder %s15, 1
    %p59 = por %p57, %p58
    %p61 = scmp.ne.s32.totalorder %s44, %s60
    %p62 = scmp.eq.s32.totalorder %s15, 0
    %p63 = por %p61, %p62
    %s64 = ssub.s32 %s18, %s27
    %p65 = scmp.eq.s32.totalorder %s64, 0
    %s67 = sadd.s32 %s66, 1
    %s68 = scalar_select %p65, %s66, %s67
    %p71 = pneg %p65
    %p72 = scmp.eq.s32.totalorder %s9, 1
    %p73 = por %p71, %p72
    %p74 = scmp.ne.s32.totalorder %s66, %s69
    %p75 = scmp.eq.s32.totalorder %s9, 0
    %p76 = por %p74, %p75
    %p77 = scmp.ne.s32.totalorder %s66, %s69
    %p78 = scmp.eq.s32.totalorder %s14, 1
    %p79 = por %p77, %p78
    %p80 = scmp.ne.s32.totalorder %s69, %s70
    %p81 = scmp.eq.s32.totalorder %s14, 0
    %p82 = por %p80, %p81
    %p83 = scmp.ne.s32.totalorder %s69, %s70
    %p84 = scmp.eq.s32.totalorder %s15, 1
    %p85 = por %p83, %p84
    %p87 = scmp.ne.s32.totalorder %s70, %s86
    %p88 = scmp.eq.s32.totalorder %s15, 0
    %p89 = por %p87, %p88
    %s90 = ssub.s32 %s18, %s27
    %p91 = scmp.eq.s32.totalorder %s90, 0
    %s93 = sadd.s32 %s92, 1
    %s94 = scalar_select %p91, %s92, %s93
    %p97 = pneg %p91
    %p98 = scmp.eq.s32.totalorder %s9, 1
    %p99 = por %p97, %p98
    %p100 = scmp.ne.s32.totalorder %s92, %s95
    %p101 = scmp.eq.s32.totalorder %s9, 0
    %p102 = por %p100, %p101
    %p103 = scmp.ne.s32.totalorder %s92, %s95
    %p104 = scmp.eq.s32.totalorder %s14, 1
    %p105 = por %p103, %p104
    %p106 = scmp.ne.s32.totalorder %s95, %s96
    %p107 = scmp.eq.s32.totalorder %s14, 0
    %p108 = por %p106, %p107
    %p109 = scmp.ne.s32.totalorder %s95, %s96
    %p110 = scmp.eq.s32.totalorder %s15, 1
    %p111 = por %p109, %p110
    %p113 = scmp.ne.s32.totalorder %s96, %s112
    %p114 = scmp.eq.s32.totalorder %s15, 0
    %p115 = por %p113, %p114
    %s116 = ssub.s32 %s16, %s35
    %s117 = ssub.s32 %s17, %s31
    %s118 = sor.u32 %s116, %s117
    %s119 = ssub.s32 %s18, %s27
    %s120 = sor.u32 %s118, %s119
    %p121 = scmp.eq.s32.totalorder %s120, 0
    %s123 = sadd.s32 %s122, 1
    %s124 = scalar_select %p121, %s122, %s123
    %p127 = pneg %p121
    %p128 = scmp.eq.s32.totalorder %s9, 1
    %p129 = por %p127, %p128
    %p130 = scmp.ne.s32.totalorder %s122, %s125
    %p131 = scmp.eq.s32.totalorder %s9, 0
    %p132 = por %p130, %p131
    %p133 = scmp.ne.s32.totalorder %s122, %s125
    %p134 = scmp.eq.s32.totalorder %s14, 1
    %p135 = por %p133, %p134
    %p136 = scmp.ne.s32.totalorder %s125, %s126
    %p137 = scmp.eq.s32.totalorder %s14, 0
    %p138 = por %p136, %p137
    %p139 = scmp.ne.s32.totalorder %s125, %s126
    %p140 = scmp.eq.s32.totalorder %s15, 1
    %p141 = por %p139, %p140
    %p143 = scmp.ne.s32.totalorder %s126, %s142
    %p144 = scmp.eq.s32.totalorder %s15, 0
    %p145 = por %p143, %p144
    %p146 = scmp.le.s32.totalorder 1, %s9
    %p147 = scmp.lt.s32.totalorder %s9, 3
    %p148 = pnand %p146, %p147
    %p149 = pneg %p148
    // Predicated region
    $region9: #{conv_bn_relu_pallas.1} parent=5 // pred_check
      _
    $region10: #{conv_bn_relu_pallas.1} parent=5 // pred_check_branch
      %151 = sbr.rel (%p148) target = $region12
    $region11: #{conv_bn_relu_pallas.1} parent=5 // pred_region
      %s152 = ssub.s32 %s9, 1
      // Predicated region
      $region13: #{conv_bn_relu_pallas.1} parent=11 // pred_check
        %p153 = pneg %p82
      $region14: #{conv_bn_relu_pallas.1} parent=11 // pred_check_branch
        %155 = sbr.rel (%p153) target = $region16
      $region15: #{conv_bn_relu_pallas.1} parent=11 // pred_region
        %p156 = scmp.lt.s32.totalorder %s21, 0
        %s157 = scalar_select %p156, %s21, 0
        %s158 = smul.addr %s157, 4
        %s159 = scalar_lea.vmem %s1, %s158
      $region16: #{conv_bn_relu_pallas.1} parent=11 // pred_fallthru
        _
      // Predicated region
      $region17: #{conv_bn_relu_pallas.1} parent=11 // pred_check
        %p160 = pneg %p108
      $region18: #{conv_bn_relu_pallas.1} parent=11 // pred_check_branch
        %162 = sbr.rel (%p160) target = $region20
      $region19: #{conv_bn_relu_pallas.1} parent=11 // pred_region
        %p163 = scmp.lt.s32.totalorder %s21, 0
        %s164 = scalar_select %p163, %s21, 0
        %s165 = smul.addr %s164, 2
        %s166 = scalar_lea.vmem %s2, %s165
      $region20: #{conv_bn_relu_pallas.1} parent=11 // pred_fallthru
        _
    $region12: #{conv_bn_relu_pallas.1} parent=5 // pred_fallthru
      _
    %p167 = scmp.lt.s32.totalorder %s9, 2
    // Predicated region
    $region21: #{conv_bn_relu_pallas.1} parent=5 // pred_check
      %p168 = pneg %p167
    $region22: #{conv_bn_relu_pallas.1} parent=5 // pred_check_branch
      %170 = sbr.rel (%p168) target = $region24
    $region23: #{conv_bn_relu_pallas.1} parent=5 // pred_region
      // Predicated region
      $region25: #{conv_bn_relu_pallas.1} parent=23 // pred_check
        %p171 = pneg %p50
      $region26: #{conv_bn_relu_pallas.1} parent=23 // pred_check_branch
        %173 = sbr.rel (%p171) target = $region28
      $region27: #{conv_bn_relu_pallas.1} parent=23 // pred_region
        %p174 = scmp.lt.s32.totalorder %s16, 1
        %s175 = scalar_select %p174, %s16, 1
        %p176 = scmp.lt.s32.totalorder %s17, 0
        %s177 = scalar_select %p176, %s17, 0
        %s178 = smul.addr %s177, 32
        %s179 = smul.addr %s175, 32
        %s180 = sadd.s32 %s178, %s179
        %s181 = smul.addr %s180, 4
        %s182 = scalar_lea.vmem %s0, %s181
      $region28: #{conv_bn_relu_pallas.1} parent=23 // pred_fallthru
        _
    $region24: #{conv_bn_relu_pallas.1} parent=5 // pred_fallthru
      _
    %p183 = scmp.le.s32.totalorder 1, %s9
    %p184 = scmp.lt.s32.totalorder %s9, 3
    %p185 = pnand %p183, %p184
    %p186 = pneg %p185
    // Predicated region
    $region29: #{conv_bn_relu_pallas.1} parent=5 // pred_check
      _
    $region30: #{conv_bn_relu_pallas.1} parent=5 // pred_check_branch
      %188 = sbr.rel (%p185) target = $region32
    $region31: #{conv_bn_relu_pallas.1} parent=5 // pred_region
      %s189 = ssub.s32 %s9, 1
      %p190 = scmp.lt.s32.totalorder %s19, 1
      %s191 = scalar_select %p190, %s19, 1
      %p192 = scmp.lt.s32.totalorder %s20, 0
      %s193 = scalar_select %p192, %s20, 0
      %s194 = smul.addr %s193, 32
      %s195 = smul.addr %s191, 32
      %s196 = sadd.s32 %s194, %s195
      %s197 = smul.addr %s196, 4
      %s198 = scalar_lea.vmem %s0, %s197
      %p199 = pneg %p56
      %p200 = pneg %p53
      %p201 = scmp.lt.s32.totalorder %s21, 0
      %s202 = scalar_select %p201, %s21, 0
      %s203 = smul.addr %s202, 4
      %s204 = scalar_lea.vmem %s1, %s203
      %p205 = pneg %p82
      %p206 = pneg %p79
      %p207 = scmp.lt.s32.totalorder %s21, 0
      %s208 = scalar_select %p207, %s21, 0
      %s209 = smul.addr %s208, 2
      %s210 = scalar_lea.vmem %s2, %s209
      %p211 = pneg %p108
      %p212 = pneg %p105
      %p213 = pneg %p138
      %p214 = pneg %p135
      %s215 = smul.u32 14, %s20
      %p216 = scmp.lt.s32.totalorder %s19, 1
      %s217 = scalar_select %p216, %s19, 1
      %p218 = scmp.lt.s32.totalorder %s215, 13
      %s219 = scalar_select %p218, %s215, 13
      %p220 = scmp.lt.s32.totalorder %s21, 0
      %s221 = scalar_select %p220, %s21, 0
      %s222 = smul.addr %s219, 2
      %s223 = sadd.s32 %s221, %s222
      %s224 = smul.addr %s217, 28
      %s225 = sadd.s32 %s223, %s224
      %s226 = smul.addr %s225, 4
      %s227 = scalar_lea.vmem %s3, %s226
      %p228 = scmp.lt.s32.totalorder %s19, 1
      %s229 = scalar_select %p228, %s19, 1
      %p230 = scmp.lt.s32.totalorder %s20, 0
      %s231 = scalar_select %p230, %s20, 0
      %s232 = smul.addr %s231, 32
      %s233 = smul.addr %s229, 32
      %s234 = sadd.s32 %s232, %s233
      %s235 = smul.addr %s234, 4
      %s236 = scalar_lea.vmem %s0, %s235
      %p237 = scmp.lt.s32.totalorder %s21, 0
      %s238 = scalar_select %p237, %s21, 0
      %s239 = smul.addr %s238, 4
      %s240 = scalar_lea.vmem %s1, %s239
      %p241 = scmp.lt.s32.totalorder %s21, 0
      %s242 = scalar_select %p241, %s21, 0
      %s243 = smul.addr %s242, 2
      %s244 = scalar_lea.vmem %s2, %s243
      %s245 = smul.u32 14, %s20
      %p246 = scmp.lt.s32.totalorder %s19, 1
      %s247 = scalar_select %p246, %s19, 1
      %p248 = scmp.lt.s32.totalorder %s245, 13
      %s249 = scalar_select %p248, %s245, 13
      %p250 = scmp.lt.s32.totalorder %s21, 0
      %s251 = scalar_select %p250, %s21, 0
      %s252 = smul.addr %s249, 2
      %s253 = sadd.s32 %s251, %s252
      %s254 = smul.addr %s247, 28
      %s255 = sadd.s32 %s253, %s254
      %s256 = smul.addr %s255, 4
      %s257 = scalar_lea.vmem %s3, %s256
      %s258 = smul.u32 14, %s20
      %v260 = vld [vmem:[%s236] sm:$0xf]
      %v261 = vld [vmem:[%s236 + $0x4] sm:$0xf]
      %v262 = vld [vmem:[%s236 + $0x8] sm:$0xf]
      %v263 = vld [vmem:[%s236 + $0xc] sm:$0xf]
      %v264 = vld [vmem:[%s236 + $0x10] sm:$0xf]
      %v265 = vld [vmem:[%s236 + $0x14] sm:$0xf]
      %v266 = vld [vmem:[%s236 + $0x18] sm:$0xf]
      %v267 = vld [vmem:[%s236 + $0x1c] sm:$0xf]
      %v268 = vld [vmem:[%s236 + $0x20] sm:$0xf]
      %v269 = vld [vmem:[%s236 + $0x24] sm:$0xf]
      %v270 = vld [vmem:[%s236 + $0x28] sm:$0xf]
      %v271 = vld [vmem:[%s236 + $0x2c] sm:$0xf]
      %v272 = vld [vmem:[%s236 + $0x30] sm:$0xf]
      %v273 = vld [vmem:[%s236 + $0x34] sm:$0xf]
      %v274 = vld [vmem:[%s236 + $0x38] sm:$0xf]
      %v275 = vld [vmem:[%s236 + $0x3c] sm:$0xf]
      %v276 = vld [vmem:[%s236 + $0x40] sm:$0xf]
      %v277 = vld [vmem:[%s236 + $0x44] sm:$0xf]
      %v278 = vld [vmem:[%s236 + $0x48] sm:$0xf]
      %v279 = vld [vmem:[%s236 + $0x4c] sm:$0xf]
      %v280 = vld [vmem:[%s236 + $0x50] sm:$0xf]
      %v281 = vld [vmem:[%s236 + $0x54] sm:$0xf]
      %v282 = vld [vmem:[%s236 + $0x58] sm:$0xf]
      %v283 = vld [vmem:[%s236 + $0x5c] sm:$0xf]
      %v284 = vld [vmem:[%s236 + $0x60] sm:$0xf]
      %v285 = vld [vmem:[%s236 + $0x64] sm:$0xf]
      %v286 = vld [vmem:[%s236 + $0x68] sm:$0xf]
      %v287 = vld [vmem:[%s236 + $0x6c] sm:$0xf]
      %v288 = vld [vmem:[%s240] sm:$0xf]
      %v289 = vld [vmem:[%s240 + $0x4] sm:$0x3]
      %v290 = vld [vmem:[%s236 + $0x70] sm:$0xf]
      %v291 = vld [vmem:[%s236 + $0x74] sm:$0xf]
      %s292 = scalar_lea.vmem %s240, 8
      %v293 = vld [vmem:[%s292] sm:$0xf]
      %v294 = vld [vmem:[%s292 + $0x4] sm:$0x3]
      %v323 = vunpack.c.l.b16 %v262
      %v324 = vunpack.c.l.b16 %v263
      %v325 = vunpack.c.l.b16 %v264
      %v326 = vunpack.c.l.b16 %v265
      %v327 = vunpack.c.l.b16 %v266
      %v328 = vunpack.c.l.b16 %v267
      %v329 = vunpack.c.l.b16 %v268
      %v330 = vunpack.c.l.b16 %v269
      %v331 = vunpack.c.l.b16 %v270
      %v332 = vunpack.c.l.b16 %v271
      %v333 = vunpack.c.l.b16 %v272
      %v334 = vunpack.c.l.b16 %v273
      %v335 = vunpack.c.l.b16 %v274
      %v336 = vunpack.c.l.b16 %v275
      %v337 = vunpack.c.l.b16 %v276
      %v338 = vunpack.c.l.b16 %v277
      %v339 = vunpack.c.l.b16 %v278
      %v340 = vunpack.c.l.b16 %v279
      %v341 = vunpack.c.l.b16 %v280
      %v342 = vunpack.c.l.b16 %v281
      %v343 = vunpack.c.l.b16 %v282
      %v344 = vunpack.c.l.b16 %v283
      %v345 = vunpack.c.l.b16 %v284
      %v346 = vunpack.c.l.b16 %v285
      %v347 = vunpack.c.l.b16 %v286
      %v348 = vunpack.c.l.b16 %v287
      %v349 = vunpack.c.l.b16 %v290
      %v350 = vunpack.c.l.b16 %v291
      %v351 = vpack.c.b16 %v324, %v323
      %v352 = vpack.c.b16 %v326, %v325
      %v353 = vpack.c.b16 %v328, %v327
      %v354 = vpack.c.b16 %v330, %v329
      %v355 = vpack.c.b16 %v332, %v331
      %v356 = vpack.c.b16 %v334, %v333
      %v357 = vpack.c.b16 %v336, %v335
      %v358 = vpack.c.b16 %v338, %v337
      %v359 = vpack.c.b16 %v340, %v339
      %v360 = vpack.c.b16 %v342, %v341
      %v361 = vpack.c.b16 %v344, %v343
      %v362 = vpack.c.b16 %v346, %v345
      %v363 = vpack.c.b16 %v348, %v347
      %v364 = vpack.c.b16 %v350, %v349
      %v367 = vunpack.c.l.b16 %v293
      %v368 = vunpack.c.l.b16 %v294
      %v369 = vpack.c.b16 %v368, %v367
      %vm370 = vcmask 97280
      %v372 = vsel %vm370, %v351, 0
      %v375 = vsel %vm370, %v352, 0
      %v378 = vsel %vm370, %v353, 0
      %v381 = vsel %vm370, %v354, 0
      %v384 = vsel %vm370, %v355, 0
      %v387 = vsel %vm370, %v356, 0
      %v390 = vsel %vm370, %v357, 0
      %v393 = vsel %vm370, %v358, 0
      %v396 = vsel %vm370, %v359, 0
      %v399 = vsel %vm370, %v360, 0
      %v402 = vsel %vm370, %v361, 0
      %v405 = vsel %vm370, %v362, 0
      %v408 = vsel %vm370, %v363, 0
      %v411 = vsel %vm370, %v364, 0
      %vm413 = vcmask 1045504
      %v415 = vsel %vm413, %v369, 0
      %417 = vmatprep.subr.bf16.mxu0 0
      %418 = vmatpush1.bf16.msra.mxu0 %v415
      %419 = vmatprep.subr.bf16.mxu0 0
      %420 = vmatpush1.bf16.msra.mxu0 0
      %421 = vmatprep.subr.bf16.mxu0 0
      %422 = vmatpush1.bf16.msra.mxu0 0
      %423 = vmatprep.subr.bf16.mxu0 0
      %424 = vmatpush1.bf16.msra.mxu0 0
      %425 = vmatprep.subr.bf16.mxu0 0
      %426 = vmatpush1.bf16.msra.mxu0 0
      %427 = vmatprep.subr.bf16.mxu0 0
      %428 = vmatpush1.bf16.msra.mxu0 0
      %429 = vmatprep.subr.bf16.mxu0 0
      %430 = vmatpush1.bf16.msra.mxu0 0
      %431 = vmatprep.subr.bf16.mxu0 0
      %432 = vmatpush1.bf16.msra.mxu0 0
      %433 = vmatprep.subr.bf16.mxu0 0
      %434 = vmatpush1.bf16.msra.mxu0 0
      %435 = vmatprep.subr.bf16.mxu0 0
      %436 = vmatpush1.bf16.msra.mxu0 0
      %437 = vmatprep.subr.bf16.mxu0 0
      %438 = vmatpush1.bf16.msra.mxu0 0
      %439 = vmatprep.subr.bf16.mxu0 0
      %440 = vmatpush1.bf16.msra.mxu0 0
      %441 = vmatprep.subr.bf16.mxu0 0
      %442 = vmatpush1.bf16.msra.mxu0 0
      %443 = vmatprep.subr.bf16.mxu0 0
      %444 = vmatpush1.bf16.msra.mxu0 0
      %445 = vmatprep.subr.bf16.mxu0 0
      %446 = vmatpush1.bf16.msra.mxu0 0
      %447 = vmatprep.subr.bf16.mxu0 0
      %448 = vmatpush1.bf16.msra.mxu0 0
      %449 = vmatprep.mubr.bf16.mxu0 0
      %450 = vmatmul.mubr.bf16.gmra.mrb[0].mxu0 %v372
      %v451 = vpop.f32.mrb[0].mxu0
      %v452 = vadd.f32 0.0, %v451
      %v453 = vpop.f32.mrb[0].mxu0
      %v454 = vpop.f32.mrb[0].mxu0
      %v455 = vadd.f32 0.0, %v454
      %v456 = vpop.f32.mrb[0].mxu0
      %457 = vmatprep.mubr.bf16.mxu0 0
      %458 = vmatmul.mubr.bf16.gmra.mrb[0].mxu0 %v375
      %v459 = vpop.f32.mrb[0].mxu0
      %v460 = vadd.f32 0.0, %v459
      %v461 = vpop.f32.mrb[0].mxu0
      %v462 = vpop.f32.mrb[0].mxu0
      %v463 = vadd.f32 0.0, %v462
      %v464 = vpop.f32.mrb[0].mxu0
      %465 = vmatprep.mubr.bf16.mxu0 0
      %466 = vmatmul.mubr.bf16.gmra.mrb[0].mxu0 %v378
      %v467 = vpop.f32.mrb[0].mxu0
      %v468 = vadd.f32 0.0, %v467
      %v469 = vpop.f32.mrb[0].mxu0
      %v470 = vpop.f32.mrb[0].mxu0
      %v471 = vadd.f32 0.0, %v470
      %v472 = vpop.f32.mrb[0].mxu0
      %473 = vmatprep.mubr.bf16.mxu0 0
      %474 = vmatmul.mubr.bf16.gmra.mrb[0].mxu0 %v381
      %v475 = vpop.f32.mrb[0].mxu0
      %v476 = vadd.f32 0.0, %v475
      %v477 = vpop.f32.mrb[0].mxu0
      %v478 = vpop.f32.mrb[0].mxu0
      %v479 = vadd.f32 0.0, %v478
      %v480 = vpop.f32.mrb[0].mxu0
      %481 = vmatprep.mubr.bf16.mxu0 0
      %482 = vmatmul.mubr.bf16.gmra.mrb[0].mxu0 %v384
      %v483 = vpop.f32.mrb[0].mxu0
      %v484 = vadd.f32 0.0, %v483
      %v485 = vpop.f32.mrb[0].mxu0
      %v486 = vpop.f32.mrb[0].mxu0
      %v487 = vadd.f32 0.0, %v486
      %v488 = vpop.f32.mrb[0].mxu0
      %489 = vmatprep.mubr.bf16.mxu0 0
      %490 = vmatmul.mubr.bf16.gmra.mrb[0].mxu0 %v387
      %v491 = vpop.f32.mrb[0].mxu0
      %v492 = vadd.f32 0.0, %v491
      %v493 = vpop.f32.mrb[0].mxu0
      %v494 = vpop.f32.mrb[0].mxu0
      %v495 = vadd.f32 0.0, %v494
      %v496 = vpop.f32.mrb[0].mxu0
      %497 = vmatprep.mubr.bf16.mxu0 0
      %498 = vmatmul.mubr.bf16.gmra.mrb[0].mxu0 %v390
      %v499 = vpop.f32.mrb[0].mxu0
      %v500 = vadd.f32 0.0, %v499
      %v501 = vpop.f32.mrb[0].mxu0
      %v502 = vpop.f32.mrb[0].mxu0
      %v503 = vadd.f32 0.0, %v502
      %v504 = vpop.f32.mrb[0].mxu0
      %505 = vmatprep.mubr.bf16.mxu0 0
      %506 = vmatmul.mubr.bf16.gmra.mrb[0].mxu0 %v393
      %v507 = vpop.f32.mrb[0].mxu0
      %v508 = vadd.f32 0.0, %v507
      %v509 = vpop.f32.mrb[0].mxu0
      %v510 = vpop.f32.mrb[0].mxu0
      %v511 = vadd.f32 0.0, %v510
      %v512 = vpop.f32.mrb[0].mxu0
      %513 = vmatprep.mubr.bf16.mxu0 0
      %514 = vmatmul.mubr.bf16.gmra.mrb[0].mxu0 %v396
      %v515 = vpop.f32.mrb[0].mxu0
      %v516 = vadd.f32 0.0, %v515
      %v517 = vpop.f32.mrb[0].mxu0
      %v518 = vpop.f32.mrb[0].mxu0
      %v519 = vadd.f32 0.0, %v518
      %v520 = vpop.f32.mrb[0].mxu0
      %521 = vmatprep.mubr.bf16.mxu0 0
      %522 = vmatmul.mubr.bf16.gmra.mrb[0].mxu0 %v399
      %v523 = vpop.f32.mrb[0].mxu0
      %v524 = vadd.f32 0.0, %v523
      %v525 = vpop.f32.mrb[0].mxu0
      %v526 = vpop.f32.mrb[0].mxu0
      %v527 = vadd.f32 0.0, %v526
      %v528 = vpop.f32.mrb[0].mxu0
      %529 = vmatprep.mubr.bf16.mxu0 0
      %530 = vmatmul.mubr.bf16.gmra.mrb[0].mxu0 %v402
      %v531 = vpop.f32.mrb[0].mxu0
      %v532 = vadd.f32 0.0, %v531
      %v533 = vpop.f32.mrb[0].mxu0
      %v534 = vpop.f32.mrb[0].mxu0
      %v535 = vadd.f32 0.0, %v534
      %v536 = vpop.f32.mrb[0].mxu0
      %537 = vmatprep.mubr.bf16.mxu0 0
      %538 = vmatmul.mubr.bf16.gmra.mrb[0].mxu0 %v405
      %v539 = vpop.f32.mrb[0].mxu0
      %v540 = vadd.f32 0.0, %v539
      %v541 = vpop.f32.mrb[0].mxu0
      %v542 = vpop.f32.mrb[0].mxu0
      %v543 = vadd.f32 0.0, %v542
      %v544 = vpop.f32.mrb[0].mxu0
      %545 = vmatprep.mubr.bf16.mxu0 0
      %546 = vmatmul.mubr.bf16.gmra.mrb[0].mxu0 %v408
      %v547 = vpop.f32.mrb[0].mxu0
      %v548 = vadd.f32 0.0, %v547
      %v549 = vpop.f32.mrb[0].mxu0
      %v550 = vpop.f32.mrb[0].mxu0
      %v551 = vadd.f32 0.0, %v550
      %v552 = vpop.f32.mrb[0].mxu0
      %553 = vmatprep.mubr.bf16.mxu0 0
      %554 = vmatmul.mubr.bf16.gmra.mrb[0].mxu0 %v411
      %v555 = vpop.f32.mrb[0].mxu0
      %v556 = vadd.f32 0.0, %v555
      %v557 = vpop.f32.mrb[0].mxu0
      %v558 = vpop.f32.mrb[0].mxu0
      %v559 = vadd.f32 0.0, %v558
      %v560 = vpop.f32.mrb[0].mxu0
      %561 = vdwg.mxu0
      %v564 = vunpack.c.l.b16 %v260
      %v565 = vunpack.c.l.b16 %v261
      %v566 = vpack.c.b16 %v565, %v564
      %v569 = vunpack.c.l.b16 %v288
      %v570 = vunpack.c.l.b16 %v289
      %v571 = vpack.c.b16 %v570, %v569
      %v573 = vsel %vm370, %v566, 0
      %v576 = vsel %vm413, %v571, 0
      %578 = vmatprep.subr.bf16.mxu0 0
      %579 = vmatpush1.bf16.msra.mxu0 %v576
      %580 = vmatprep.subr.bf16.mxu0 0
      %581 = vmatpush1.bf16.msra.mxu0 0
      %582 = vmatprep.subr.bf16.mxu0 0
      %583 = vmatpush1.bf16.msra.mxu0 0
      %584 = vmatprep.subr.bf16.mxu0 0
      %585 = vmatpush1.bf16.msra.mxu0 0
      %586 = vmatprep.subr.bf16.mxu0 0
      %587 = vmatpush1.bf16.msra.mxu0 0
      %588 = vmatprep.subr.bf16.mxu0 0
      %589 = vmatpush1.bf16.msra.mxu0 0
      %590 = vmatprep.subr.bf16.mxu0 0
      %591 = vmatpush1.bf16.msra.mxu0 0
      %592 = vmatprep.subr.bf16.mxu0 0
      %593 = vmatpush1.bf16.msra.mxu0 0
      %594 = vmatprep.subr.bf16.mxu0 0
      %595 = vmatpush1.bf16.msra.mxu0 0
      %596 = vmatprep.subr.bf16.mxu0 0
      %597 = vmatpush1.bf16.msra.mxu0 0
      %598 = vmatprep.subr.bf16.mxu0 0
      %599 = vmatpush1.bf16.msra.mxu0 0
      %600 = vmatprep.subr.bf16.mxu0 0
      %601 = vmatpush1.bf16.msra.mxu0 0
      %602 = vmatprep.subr.bf16.mxu0 0
      %603 = vmatpush1.bf16.msra.mxu0 0
      %604 = vmatprep.subr.bf16.mxu0 0
      %605 = vmatpush1.bf16.msra.mxu0 0
      %606 = vmatprep.subr.bf16.mxu0 0
      %607 = vmatpush1.bf16.msra.mxu0 0
      %608 = vmatprep.subr.bf16.mxu0 0
      %609 = vmatpush1.bf16.msra.mxu0 0
      %610 = vmatprep.mubr.bf16.mxu0 0
      %611 = vmatmul.mubr.bf16.gmra.mrb[0].mxu0 %v573
      %v612 = vpop.f32.mrb[0].mxu0
      %v613 = vadd.f32 %v452, %v612
      %v614 = vpop.f32.mrb[0].mxu0
      %v615 = vpop.f32.mrb[0].mxu0
      %v616 = vadd.f32 %v455, %v615
      %v617 = vpop.f32.mrb[0].mxu0
      %618 = vmatprep.mubr.bf16.mxu0 0
      %619 = vmatmul.mubr.bf16.gmra.mrb[0].mxu0 %v372
      %v620 = vpop.f32.mrb[0].mxu0
      %v621 = vadd.f32 %v460, %v620
      %v622 = vpop.f32.mrb[0].mxu0
      %v623 = vpop.f32.mrb[0].mxu0
      %v624 = vadd.f32 %v463, %v623
      %v625 = vpop.f32.mrb[0].mxu0
      %626 = vmatprep.mubr.bf16.mxu0 0
      %627 = vmatmul.mubr.bf16.gmra.mrb[0].mxu0 %v375
      %v628 = vpop.f32.mrb[0].mxu0
      %v629 = vadd.f32 %v468, %v628
      %v630 = vpop.f32.mrb[0].mxu0
      %v631 = vpop.f32.mrb[0].mxu0
      %v632 = vadd.f32 %v471, %v631
      %v633 = vpop.f32.mrb[0].mxu0
      %634 = vmatprep.mubr.bf16.mxu0 0
      %635 = vmatmul.mubr.bf16.gmra.mrb[0].mxu0 %v378
      %v636 = vpop.f32.mrb[0].mxu0
      %v637 = vadd.f32 %v476, %v636
      %v638 = vpop.f32.mrb[0].mxu0
      %v639 = vpop.f32.mrb[0].mxu0
      %v640 = vadd.f32 %v479, %v639
      %v641 = vpop.f32.mrb[0].mxu0
      %642 = vmatprep.mubr.bf16.mxu0 0
      %643 = vmatmul.mubr.bf16.gmra.mrb[0].mxu0 %v381
      %v644 = vpop.f32.mrb[0].mxu0
      %v645 = vadd.f32 %v484, %v644
      %v646 = vpop.f32.mrb[0].mxu0
      %v647 = vpop.f32.mrb[0].mxu0
      %v648 = vadd.f32 %v487, %v647
      %v649 = vpop.f32.mrb[0].mxu0
      %650 = vmatprep.mubr.bf16.mxu0 0
      %651 = vmatmul.mubr.bf16.gmra.mrb[0].mxu0 %v384
      %v652 = vpop.f32.mrb[0].mxu0
      %v653 = vadd.f32 %v492, %v652
      %v654 = vpop.f32.mrb[0].mxu0
      %v655 = vpop.f32.mrb[0].mxu0
      %v656 = vadd.f32 %v495, %v655
      %v657 = vpop.f32.mrb[0].mxu0
      %658 = vmatprep.mubr.bf16.mxu0 0
      %659 = vmatmul.mubr.bf16.gmra.mrb[0].mxu0 %v387
      %v660 = vpop.f32.mrb[0].mxu0
      %v661 = vadd.f32 %v500, %v660
      %v662 = vpop.f32.mrb[0].mxu0
      %v663 = vpop.f32.mrb[0].mxu0
      %v664 = vadd.f32 %v503, %v663
      %v665 = vpop.f32.mrb[0].mxu0
      %666 = vmatprep.mubr.bf16.mxu0 0
      %667 = vmatmul.mubr.bf16.gmra.mrb[0].mxu0 %v390
      %v668 = vpop.f32.mrb[0].mxu0
      %v669 = vadd.f32 %v508, %v668
      %v670 = vpop.f32.mrb[0].mxu0
      %v671 = vpop.f32.mrb[0].mxu0
      %v672 = vadd.f32 %v511, %v671
      %v673 = vpop.f32.mrb[0].mxu0
      %674 = vmatprep.mubr.bf16.mxu0 0
      %675 = vmatmul.mubr.bf16.gmra.mrb[0].mxu0 %v393
      %v676 = vpop.f32.mrb[0].mxu0
      %v677 = vadd.f32 %v516, %v676
      %v678 = vpop.f32.mrb[0].mxu0
      %v679 = vpop.f32.mrb[0].mxu0
      %v680 = vadd.f32 %v519, %v679
      %v681 = vpop.f32.mrb[0].mxu0
      %682 = vmatprep.mubr.bf16.mxu0 0
      %683 = vmatmul.mubr.bf16.gmra.mrb[0].mxu0 %v396
      %v684 = vpop.f32.mrb[0].mxu0
      %v685 = vadd.f32 %v524, %v684
      %v686 = vpop.f32.mrb[0].mxu0
      %v687 = vpop.f32.mrb[0].mxu0
      %v688 = vadd.f32 %v527, %v687
      %v689 = vpop.f32.mrb[0].mxu0
      %690 = vmatprep.mubr.bf16.mxu0 0
      %691 = vmatmul.mubr.bf16.gmra.mrb[0].mxu0 %v399
      %v692 = vpop.f32.mrb[0].mxu0
      %v693 = vadd.f32 %v532, %v692
      %v694 = vpop.f32.mrb[0].mxu0
      %v695 = vpop.f32.mrb[0].mxu0
      %v696 = vadd.f32 %v535, %v695
      %v697 = vpop.f32.mrb[0].mxu0
      %698 = vmatprep.mubr.bf16.mxu0 0
      %699 = vmatmul.mubr.bf16.gmra.mrb[0].mxu0 %v402
      %v700 = vpop.f32.mrb[0].mxu0
      %v701 = vadd.f32 %v540, %v700
      %v702 = vpop.f32.mrb[0].mxu0
      %v703 = vpop.f32.mrb[0].mxu0
      %v704 = vadd.f32 %v543, %v703
      %v705 = vpop.f32.mrb[0].mxu0
      %706 = vmatprep.mubr.bf16.mxu0 0
      %707 = vmatmul.mubr.bf16.gmra.mrb[0].mxu0 %v405
      %v708 = vpop.f32.mrb[0].mxu0
      %v709 = vadd.f32 %v548, %v708
      %v710 = vpop.f32.mrb[0].mxu0
      %v711 = vpop.f32.mrb[0].mxu0
      %v712 = vadd.f32 %v551, %v711
      %v713 = vpop.f32.mrb[0].mxu0
      %714 = vmatprep.mubr.bf16.mxu0 0
      %715 = vmatmul.mubr.bf16.gmra.mrb[0].mxu0 %v408
      %v716 = vpop.f32.mrb[0].mxu0
      %v717 = vadd.f32 %v556, %v716
      %v718 = vpop.f32.mrb[0].mxu0
      %v719 = vpop.f32.mrb[0].mxu0
      %v720 = vadd.f32 %v559, %v719
      %v721 = vpop.f32.mrb[0].mxu0
      %722 = vdwg.mxu0
      %v723 = vld [vmem:[%s236 + $0x10] sm:$0xf]
      %v724 = vld [vmem:[%s236 + $0x14] sm:$0xf]
      %v725 = vld [vmem:[%s236 + $0x18] sm:$0xf]
      %v726 = vld [vmem:[%s236 + $0x1c] sm:$0xf]
      %v727 = vld [vmem:[%s236 + $0x20] sm:$0xf]
      %v728 = vld [vmem:[%s236 + $0x24] sm:$0xf]
      %v729 = vld [vmem:[%s236 + $0x28] sm:$0xf]
      %v730 = vld [vmem:[%s236 + $0x2c] sm:$0xf]
      %v731 = vld [vmem:[%s236 + $0x30] sm:$0xf]
      %v732 = vld [vmem:[%s236 + $0x34] sm:$0xf]
      %v733 = vld [vmem:[%s236 + $0x38] sm:$0xf]
      %v734 = vld [vmem:[%s236 + $0x3c] sm:$0xf]
      %v735 = vld [vmem:[%s236 + $0x40] sm:$0xf]
      %v736 = vld [vmem:[%s236 + $0x44] sm:$0xf]
      %v737 = vld [vmem:[%s236 + $0x48] sm:$0xf]
      %v738 = vld [vmem:[%s236 + $0x4c] sm:$0xf]
      %v739 = vld [vmem:[%s236 + $0x50] sm:$0xf]
      %v740 = vld [vmem:[%s236 + $0x54] sm:$0xf]
      %v741 = vld [vmem:[%s236 + $0x58] sm:$0xf]
      %v742 = vld [vmem:[%s236 + $0x5c] sm:$0xf]
      %v743 = vld [vmem:[%s236 + $0x60] sm:$0xf]
      %v744 = vld [vmem:[%s236 + $0x64] sm:$0xf]
      %v745 = vld [vmem:[%s236 + $0x68] sm:$0xf]
      %v746 = vld [vmem:[%s236 + $0x6c] sm:$0xf]
      %v747 = vld [vmem:[%s236 + $0x70] sm:$0xf]
      %v748 = vld [vmem:[%s236 + $0x74] sm:$0xf]
      %v749 = vld [vmem:[%s236 + $0x78] sm:$0xf]
      %v750 = vld [vmem:[%s236 + $0x7c] sm:$0xf]
      %s751 = scalar_lea.vmem %s240, 16
      %v752 = vld [vmem:[%s751] sm:$0xf]
      %v753 = vld [vmem:[%s751 + $0x4] sm:$0x3]
      %v782 = vunpack.c.l.b16 %v723
      %v783 = vunpack.c.l.b16 %v724
      %v784 = vunpack.c.l.b16 %v725
      %v785 = vunpack.c.l.b16 %v726
      %v786 = vunpack.c.l.b16 %v727
      %v787 = vunpack.c.l.b16 %v728
      %v788 = vunpack.c.l.b16 %v729
      %v789 = vunpack.c.l.b16 %v730
      %v790 = vunpack.c.l.b16 %v731
      %v791 = vunpack.c.l.b16 %v732
      %v792 = vunpack.c.l.b16 %v733
      %v793 = vunpack.c.l.b16 %v734
      %v794 = vunpack.c.l.b16 %v735
      %v795 = vunpack.c.l.b16 %v736
      %v796 = vunpack.c.l.b16 %v737
      %v797 = vunpack.c.l.b16 %v738
      %v798 = vunpack.c.l.b16 %v739
      %v799 = vunpack.c.l.b16 %v740
      %v800 = vunpack.c.l.b16 %v741
      %v801 = vunpack.c.l.b16 %v742
      %v802 = vunpack.c.l.b16 %v743
      %v803 = vunpack.c.l.b16 %v744
      %v804 = vunpack.c.l.b16 %v745
      %v805 = vunpack.c.l.b16 %v746
      %v806 = vunpack.c.l.b16 %v747
      %v807 = vunpack.c.l.b16 %v748
      %v808 = vunpack.c.l.b16 %v749
      %v809 = vunpack.c.l.b16 %v750
      %v810 = vpack.c.b16 %v783, %v782
      %v811 = vpack.c.b16 %v785, %v784
      %v812 = vpack.c.b16 %v787, %v786
      %v813 = vpack.c.b16 %v789, %v788
      %v814 = vpack.c.b16 %v791, %v790
      %v815 = vpack.c.b16 %v793, %v792
      %v816 = vpack.c.b16 %v795, %v794
      %v817 = vpack.c.b16 %v797, %v796
      %v818 = vpack.c.b16 %v799, %v798
      %v819 = vpack.c.b16 %v801, %v800
      %v820 = vpack.c.b16 %v803, %v802
      %v821 = vpack.c.b16 %v805, %v804
      %v822 = vpack.c.b16 %v807, %v806
      %v823 = vpack.c.b16 %v809, %v808
      %v826 = vunpack.c.l.b16 %v752
      %v827 = vunpack.c.l.b16 %v753
      %v828 = vpack.c.b16 %v827, %v826
      %v830 = vsel %vm370, %v810, 0
      %v833 = vsel %vm370, %v811, 0
      %v836 = vsel %vm370, %v812, 0
      %v839 = vsel %vm370, %v813, 0
      %v842 = vsel %vm370, %v814, 0
      %v845 = vsel %vm370, %v815, 0
      %v848 = vsel %vm370, %v816, 0
      %v851 = vsel %vm370, %v817, 0
      %v854 = vsel %vm370, %v818, 0
      %v857 = vsel %vm370, %v819, 0
      %v860 = vsel %vm370, %v820, 0
      %v863 = vsel %vm370, %v821, 0
      %v866 = vsel %vm370, %v822, 0
      %v869 = vsel %vm370, %v823, 0
      %v872 = vsel %vm413, %v828, 0
      %874 = vmatprep.subr.bf16.mxu0 0
      %875 = vmatpush1.bf16.msra.mxu0 %v872
      %876 = vmatprep.subr.bf16.mxu0 0
      %877 = vmatpush1.bf16.msra.mxu0 0
      %878 = vmatprep.subr.bf16.mxu0 0
      %879 = vmatpush1.bf16.msra.mxu0 0
      %880 = vmatprep.subr.bf16.mxu0 0
      %881 = vmatpush1.bf16.msra.mxu0 0
      %882 = vmatprep.subr.bf16.mxu0 0
      %883 = vmatpush1.bf16.msra.mxu0 0
      %884 = vmatprep.subr.bf16.mxu0 0
      %885 = vmatpush1.bf16.msra.mxu0 0
      %886 = vmatprep.subr.bf16.mxu0 0
      %887 = vmatpush1.bf16.msra.mxu0 0
      %888 = vmatprep.subr.bf16.mxu0 0
      %889 = vmatpush1.bf16.msra.mxu0 0
      %890 = vmatprep.subr.bf16.mxu0 0
      %891 = vmatpush1.bf16.msra.mxu0 0
      %892 = vmatprep.subr.bf16.mxu0 0
      %893 = vmatpush1.bf16.msra.mxu0 0
      %894 = vmatprep.subr.bf16.mxu0 0
      %895 = vmatpush1.bf16.msra.mxu0 0
      %896 = vmatprep.subr.bf16.mxu0 0
      %897 = vmatpush1.bf16.msra.mxu0 0
      %898 = vmatprep.subr.bf16.mxu0 0
      %899 = vmatpush1.bf16.msra.mxu0 0
      %900 = vmatprep.subr.bf16.mxu0 0
      %901 = vmatpush1.bf16.msra.mxu0 0
      %902 = vmatprep.subr.bf16.mxu0 0
      %903 = vmatpush1.bf16.msra.mxu0 0
      %904 = vmatprep.subr.bf16.mxu0 0
      %905 = vmatpush1.bf16.msra.mxu0 0
      %906 = vmatprep.mubr.bf16.mxu0 0
      %907 = vmatmul.mubr.bf16.gmra.mrb[0].mxu0 %v830
      %v908 = vpop.f32.mrb[0].mxu0
      %v909 = vadd.f32 0.0, %v908
      %v910 = vpop.f32.mrb[0].mxu0
      %v911 = vpop.f32.mrb[0].mxu0
      %v912 = vadd.f32 0.0, %v911
      %v913 = vpop.f32.mrb[0].mxu0
      %914 = vmatprep.mubr.bf16.mxu0 0
      %915 = vmatmul.mubr.bf16.gmra.mrb[0].mxu0 %v833
      %v916 = vpop.f32.mrb[0].mxu0
      %v917 = vadd.f32 0.0, %v916
      %v918 = vpop.f32.mrb[0].mxu0
      %v919 = vpop.f32.mrb[0].mxu0
      %v920 = vadd.f32 0.0, %v919
      %v921 = vpop.f32.mrb[0].mxu0
      %922 = vmatprep.mubr.bf16.mxu0 0
      %923 = vmatmul.mubr.bf16.gmra.mrb[0].mxu0 %v836
      %v924 = vpop.f32.mrb[0].mxu0
      %v925 = vadd.f32 0.0, %v924
      %v926 = vpop.f32.mrb[0].mxu0
      %v927 = vpop.f32.mrb[0].mxu0
      %v928 = vadd.f32 0.0, %v927
      %v929 = vpop.f32.mrb[0].mxu0
      %930 = vmatprep.mubr.bf16.mxu0 0
      %931 = vmatmul.mubr.bf16.gmra.mrb[0].mxu0 %v839
      %v932 = vpop.f32.mrb[0].mxu0
      %v933 = vadd.f32 0.0, %v932
      %v934 = vpop.f32.mrb[0].mxu0
      %v935 = vpop.f32.mrb[0].mxu0
      %v936 = vadd.f32 0.0, %v935
      %v937 = vpop.f32.mrb[0].mxu0
      %938 = vmatprep.mubr.bf16.mxu0 0
      %939 = vmatmul.mubr.bf16.gmra.mrb[0].mxu0 %v842
      %v940 = vpop.f32.mrb[0].mxu0
      %v941 = vadd.f32 0.0, %v940
      %v942 = vpop.f32.mrb[0].mxu0
      %v943 = vpop.f32.mrb[0].mxu0
      %v944 = vadd.f32 0.0, %v943
      %v945 = vpop.f32.mrb[0].mxu0
      %946 = vmatprep.mubr.bf16.mxu0 0
      %947 = vmatmul.mubr.bf16.gmra.mrb[0].mxu0 %v845
      %v948 = vpop.f32.mrb[0].mxu0
      %v949 = vadd.f32 0.0, %v948
      %v950 = vpop.f32.mrb[0].mxu0
      %v951 = vpop.f32.mrb[0].mxu0
      %v952 = vadd.f32 0.0, %v951
      %v953 = vpop.f32.mrb[0].mxu0
      %954 = vmatprep.mubr.bf16.mxu0 0
      %955 = vmatmul.mubr.bf16.gmra.mrb[0].mxu0 %v848
      %v956 = vpop.f32.mrb[0].mxu0
      %v957 = vadd.f32 0.0, %v956
      %v958 = vpop.f32.mrb[0].mxu0
      %v959 = vpop.f32.mrb[0].mxu0
      %v960 = vadd.f32 0.0, %v959
      %v961 = vpop.f32.mrb[0].mxu0
      %962 = vmatprep.mubr.bf16.mxu0 0
      %963 = vmatmul.mubr.bf16.gmra.mrb[0].mxu0 %v851
      %v964 = vpop.f32.mrb[0].mxu0
      %v965 = vadd.f32 0.0, %v964
      %v966 = vpop.f32.mrb[0].mxu0
      %v967 = vpop.f32.mrb[0].mxu0
      %v968 = vadd.f32 0.0, %v967
      %v969 = vpop.f32.mrb[0].mxu0
      %970 = vmatprep.mubr.bf16.mxu0 0
      %971 = vmatmul.mubr.bf16.gmra.mrb[0].mxu0 %v854
      %v972 = vpop.f32.mrb[0].mxu0
      %v973 = vadd.f32 0.0, %v972
      %v974 = vpop.f32.mrb[0].mxu0
      %v975 = vpop.f32.mrb[0].mxu0
      %v976 = vadd.f32 0.0, %v975
      %v977 = vpop.f32.mrb[0].mxu0
      %978 = vmatprep.mubr.bf16.mxu0 0
      %979 = vmatmul.mubr.bf16.gmra.mrb[0].mxu0 %v857
      %v980 = vpop.f32.mrb[0].mxu0
      %v981 = vadd.f32 0.0, %v980
      %v982 = vpop.f32.mrb[0].mxu0
      %v983 = vpop.f32.mrb[0].mxu0
      %v984 = vadd.f32 0.0, %v983
      %v985 = vpop.f32.mrb[0].mxu0
      %986 = vmatprep.mubr.bf16.mxu0 0
      %987 = vmatmul.mubr.bf16.gmra.mrb[0].mxu0 %v860
      %v988 = vpop.f32.mrb[0].mxu0
      %v989 = vadd.f32 0.0, %v988
      %v990 = vpop.f32.mrb[0].mxu0
      %v991 = vpop.f32.mrb[0].mxu0
      %v992 = vadd.f32 0.0, %v991
      %v993 = vpop.f32.mrb[0].mxu0
      %994 = vmatprep.mubr.bf16.mxu0 0
      %995 = vmatmul.mubr.bf16.gmra.mrb[0].mxu0 %v863
      %v996 = vpop.f32.mrb[0].mxu0
      %v997 = vadd.f32 0.0, %v996
      %v998 = vpop.f32.mrb[0].mxu0
      %v999 = vpop.f32.mrb[0].mxu0
      %v1000 = vadd.f32 0.0, %v999
      %v1001 = vpop.f32.mrb[0].mxu0
      %1002 = vmatprep.mubr.bf16.mxu0 0
      %1003 = vmatmul.mubr.bf16.gmra.mrb[0].mxu0 %v866
      %v1004 = vpop.f32.mrb[0].mxu0
      %v1005 = vadd.f32 0.0, %v1004
      %v1006 = vpop.f32.mrb[0].mxu0
      %v1007 = vpop.f32.mrb[0].mxu0
      %v1008 = vadd.f32 0.0, %v1007
      %v1009 = vpop.f32.mrb[0].mxu0
      %1010 = vmatprep.mubr.bf16.mxu0 0
      %1011 = vmatmul.mubr.bf16.gmra.mrb[0].mxu0 %v869
      %v1012 = vpop.f32.mrb[0].mxu0
      %v1013 = vadd.f32 0.0, %v1012
      %v1014 = vpop.f32.mrb[0].mxu0
      %v1015 = vpop.f32.mrb[0].mxu0
      %v1016 = vadd.f32 0.0, %v1015
      %v1017 = vpop.f32.mrb[0].mxu0
      %1018 = vdwg.mxu0
      %v1019 = vadd.f32 %v613, %v909
      %v1020 = vadd.f32 %v616, %v912
      %v1021 = vadd.f32 %v621, %v917
      %v1022 = vadd.f32 %v624, %v920
      %v1023 = vadd.f32 %v629, %v925
      %v1024 = vadd.f32 %v632, %v928
      %v1025 = vadd.f32 %v637, %v933
      %v1026 = vadd.f32 %v640, %v936
      %v1027 = vadd.f32 %v645, %v941
      %v1028 = vadd.f32 %v648, %v944
      %v1029 = vadd.f32 %v653, %v949
      %v1030 = vadd.f32 %v656, %v952
      %v1031 = vadd.f32 %v661, %v957
      %v1032 = vadd.f32 %v664, %v960
      %v1033 = vadd.f32 %v669, %v965
      %v1034 = vadd.f32 %v672, %v968
      %v1035 = vadd.f32 %v677, %v973
      %v1036 = vadd.f32 %v680, %v976
      %v1037 = vadd.f32 %v685, %v981
      %v1038 = vadd.f32 %v688, %v984
      %v1039 = vadd.f32 %v693, %v989
      %v1040 = vadd.f32 %v696, %v992
      %v1041 = vadd.f32 %v701, %v997
      %v1042 = vadd.f32 %v704, %v1000
      %v1043 = vadd.f32 %v709, %v1005
      %v1044 = vadd.f32 %v712, %v1008
      %v1045 = vadd.f32 %v717, %v1013
      %v1046 = vadd.f32 %v720, %v1016
      %v1047 = vld [vmem:[%s244] sm:$0x1]
      %v1048 = vlaneseq
      %v1049 = vshrl.u32 %v1048, 7
      %v1050 = vsub.s32 0, %v1049
      %v1051 = vrot.slane %v1047, %v1050
      %v1052 = vmul.f32 %v1019, %v1051
      %v1053 = vmul.f32 %v1020, %v1051
      %v1054 = vmul.f32 %v1021, %v1051
      %v1055 = vmul.f32 %v1022, %v1051
      %v1056 = vmul.f32 %v1023, %v1051
      %v1057 = vmul.f32 %v1024, %v1051
      %v1058 = vmul.f32 %v1025, %v1051
      %v1059 = vmul.f32 %v1026, %v1051
      %v1060 = vmul.f32 %v1027, %v1051
      %v1061 = vmul.f32 %v1028, %v1051
      %v1062 = vmul.f32 %v1029, %v1051
      %v1063 = vmul.f32 %v1030, %v1051
      %v1064 = vmul.f32 %v1031, %v1051
      %v1065 = vmul.f32 %v1032, %v1051
      %v1066 = vmul.f32 %v1033, %v1051
      %v1067 = vmul.f32 %v1034, %v1051
      %v1068 = vmul.f32 %v1035, %v1051
      %v1069 = vmul.f32 %v1036, %v1051
      %v1070 = vmul.f32 %v1037, %v1051
      %v1071 = vmul.f32 %v1038, %v1051
      %v1072 = vmul.f32 %v1039, %v1051
      %v1073 = vmul.f32 %v1040, %v1051
      %v1074 = vmul.f32 %v1041, %v1051
      %v1075 = vmul.f32 %v1042, %v1051
      %v1076 = vmul.f32 %v1043, %v1051
      %v1077 = vmul.f32 %v1044, %v1051
      %v1078 = vmul.f32 %v1045, %v1051
      %v1079 = vmul.f32 %v1046, %v1051
      %v1080 = vld [vmem:[%s244 + $0x1] sm:$0x1]
      %v1081 = vlaneseq
      %v1082 = vshrl.u32 %v1081, 7
      %v1083 = vsub.s32 0, %v1082
      %v1084 = vrot.slane %v1080, %v1083
      %v1085 = vadd.f32 %v1052, %v1084
      %v1086 = vadd.f32 %v1053, %v1084
      %v1087 = vadd.f32 %v1054, %v1084
      %v1088 = vadd.f32 %v1055, %v1084
      %v1089 = vadd.f32 %v1056, %v1084
      %v1090 = vadd.f32 %v1057, %v1084
      %v1091 = vadd.f32 %v1058, %v1084
      %v1092 = vadd.f32 %v1059, %v1084
      %v1093 = vadd.f32 %v1060, %v1084
      %v1094 = vadd.f32 %v1061, %v1084
      %v1095 = vadd.f32 %v1062, %v1084
      %v1096 = vadd.f32 %v1063, %v1084
      %v1097 = vadd.f32 %v1064, %v1084
      %v1098 = vadd.f32 %v1065, %v1084
      %v1099 = vadd.f32 %v1066, %v1084
      %v1100 = vadd.f32 %v1067, %v1084
      %v1101 = vadd.f32 %v1068, %v1084
      %v1102 = vadd.f32 %v1069, %v1084
      %v1103 = vadd.f32 %v1070, %v1084
      %v1104 = vadd.f32 %v1071, %v1084
      %v1105 = vadd.f32 %v1072, %v1084
      %v1106 = vadd.f32 %v1073, %v1084
      %v1107 = vadd.f32 %v1074, %v1084
      %v1108 = vadd.f32 %v1075, %v1084
      %v1109 = vadd.f32 %v1076, %v1084
      %v1110 = vadd.f32 %v1077, %v1084
      %v1111 = vadd.f32 %v1078, %v1084
      %v1112 = vadd.f32 %v1079, %v1084
      %v1113 = vmax.f32 %v1085, 0.0
      %v1114 = vmax.f32 %v1086, 0.0
      %v1115 = vmax.f32 %v1087, 0.0
      %v1116 = vmax.f32 %v1088, 0.0
      %v1117 = vmax.f32 %v1089, 0.0
      %v1118 = vmax.f32 %v1090, 0.0
      %v1119 = vmax.f32 %v1091, 0.0
      %v1120 = vmax.f32 %v1092, 0.0
      %v1121 = vmax.f32 %v1093, 0.0
      %v1122 = vmax.f32 %v1094, 0.0
      %v1123 = vmax.f32 %v1095, 0.0
      %v1124 = vmax.f32 %v1096, 0.0
      %v1125 = vmax.f32 %v1097, 0.0
      %v1126 = vmax.f32 %v1098, 0.0
      %v1127 = vmax.f32 %v1099, 0.0
      %v1128 = vmax.f32 %v1100, 0.0
      %v1129 = vmax.f32 %v1101, 0.0
      %v1130 = vmax.f32 %v1102, 0.0
      %v1131 = vmax.f32 %v1103, 0.0
      %v1132 = vmax.f32 %v1104, 0.0
      %v1133 = vmax.f32 %v1105, 0.0
      %v1134 = vmax.f32 %v1106, 0.0
      %v1135 = vmax.f32 %v1107, 0.0
      %v1136 = vmax.f32 %v1108, 0.0
      %v1137 = vmax.f32 %v1109, 0.0
      %v1138 = vmax.f32 %v1110, 0.0
      %v1139 = vmax.f32 %v1111, 0.0
      %v1140 = vmax.f32 %v1112, 0.0
      %v1141 = vpack.c.bf16 %v1114, %v1113
      %v1142 = vpack.c.bf16 %v1116, %v1115
      %v1143 = vpack.c.bf16 %v1118, %v1117
      %v1144 = vpack.c.bf16 %v1120, %v1119
      %v1145 = vpack.c.bf16 %v1122, %v1121
      %v1146 = vpack.c.bf16 %v1124, %v1123
      %v1147 = vpack.c.bf16 %v1126, %v1125
      %v1148 = vpack.c.bf16 %v1128, %v1127
      %v1149 = vpack.c.bf16 %v1130, %v1129
      %v1150 = vpack.c.bf16 %v1132, %v1131
      %v1151 = vpack.c.bf16 %v1134, %v1133
      %v1152 = vpack.c.bf16 %v1136, %v1135
      %v1153 = vpack.c.bf16 %v1138, %v1137
      %v1154 = vpack.c.bf16 %v1140, %v1139
      %v1169 = vunpack.c.l.b16 %v1141
      %v1170 = vunpack.c.h.b16 %v1141
      %v1171 = vunpack.c.l.b16 %v1142
      %v1172 = vunpack.c.h.b16 %v1142
      %v1173 = vunpack.c.l.b16 %v1143
      %v1174 = vunpack.c.h.b16 %v1143
      %v1175 = vunpack.c.l.b16 %v1144
      %v1176 = vunpack.c.h.b16 %v1144
      %v1177 = vunpack.c.l.b16 %v1145
      %v1178 = vunpack.c.h.b16 %v1145
      %v1179 = vunpack.c.l.b16 %v1146
      %v1180 = vunpack.c.h.b16 %v1146
      %v1181 = vunpack.c.l.b16 %v1147
      %v1182 = vunpack.c.h.b16 %v1147
      %v1183 = vunpack.c.l.b16 %v1148
      %v1184 = vunpack.c.h.b16 %v1148
      %v1185 = vunpack.c.l.b16 %v1149
      %v1186 = vunpack.c.h.b16 %v1149
      %v1187 = vunpack.c.l.b16 %v1150
      %v1188 = vunpack.c.h.b16 %v1150
      %v1189 = vunpack.c.l.b16 %v1151
      %v1190 = vunpack.c.h.b16 %v1151
      %v1191 = vunpack.c.l.b16 %v1152
      %v1192 = vunpack.c.h.b16 %v1152
      %v1193 = vunpack.c.l.b16 %v1153
      %v1194 = vunpack.c.h.b16 %v1153
      %v1195 = vunpack.c.l.b16 %v1154
      %v1196 = vunpack.c.h.b16 %v1154
      %v1197 = vpack.c.b16 %v1169, %v1169
      %v1198 = vpack.c.b16 %v1170, %v1170
      %v1199 = vpack.c.b16 %v1171, %v1171
      %v1200 = vpack.c.b16 %v1172, %v1172
      %v1201 = vpack.c.b16 %v1173, %v1173
      %v1202 = vpack.c.b16 %v1174, %v1174
      %v1203 = vpack.c.b16 %v1175, %v1175
      %v1204 = vpack.c.b16 %v1176, %v1176
      %v1205 = vpack.c.b16 %v1177, %v1177
      %v1206 = vpack.c.b16 %v1178, %v1178
      %v1207 = vpack.c.b16 %v1179, %v1179
      %v1208 = vpack.c.b16 %v1180, %v1180
      %v1209 = vpack.c.b16 %v1181, %v1181
      %v1210 = vpack.c.b16 %v1182, %v1182
      %v1211 = vpack.c.b16 %v1183, %v1183
      %v1212 = vpack.c.b16 %v1184, %v1184
      %v1213 = vpack.c.b16 %v1185, %v1185
      %v1214 = vpack.c.b16 %v1186, %v1186
      %v1215 = vpack.c.b16 %v1187, %v1187
      %v1216 = vpack.c.b16 %v1188, %v1188
      %v1217 = vpack.c.b16 %v1189, %v1189
      %v1218 = vpack.c.b16 %v1190, %v1190
      %v1219 = vpack.c.b16 %v1191, %v1191
      %v1220 = vpack.c.b16 %v1192, %v1192
      %v1221 = vpack.c.b16 %v1193, %v1193
      %v1222 = vpack.c.b16 %v1194, %v1194
      %v1223 = vpack.c.b16 %v1195, %v1195
      %v1224 = vpack.c.b16 %v1196, %v1196
      %1253 = vst [vmem:[%s257] sm:$0xf] %v1197
      %1254 = vst [vmem:[%s257 + $0x4] sm:$0x7] %v1198
      %1255 = vst [vmem:[%s257 + $0x8] sm:$0xf] %v1199
      %1256 = vst [vmem:[%s257 + $0xc] sm:$0x7] %v1200
      %1257 = vst [vmem:[%s257 + $0x10] sm:$0xf] %v1201
      %1258 = vst [vmem:[%s257 + $0x14] sm:$0x7] %v1202
      %1259 = vst [vmem:[%s257 + $0x18] sm:$0xf] %v1203
      %1260 = vst [vmem:[%s257 + $0x1c] sm:$0x7] %v1204
      %1261 = vst [vmem:[%s257 + $0x20] sm:$0xf] %v1205
      %1262 = vst [vmem:[%s257 + $0x24] sm:$0x7] %v1206
      %1263 = vst [vmem:[%s257 + $0x28] sm:$0xf] %v1207
      %1264 = vst [vmem:[%s257 + $0x2c] sm:$0x7] %v1208
      %1265 = vst [vmem:[%s257 + $0x30] sm:$0xf] %v1209
      %1266 = vst [vmem:[%s257 + $0x34] sm:$0x7] %v1210
      %1267 = vst [vmem:[%s257 + $0x38] sm:$0xf] %v1211
      %1268 = vst [vmem:[%s257 + $0x3c] sm:$0x7] %v1212
      %1269 = vst [vmem:[%s257 + $0x40] sm:$0xf] %v1213
      %1270 = vst [vmem:[%s257 + $0x44] sm:$0x7] %v1214
      %1271 = vst [vmem:[%s257 + $0x48] sm:$0xf] %v1215
      %1272 = vst [vmem:[%s257 + $0x4c] sm:$0x7] %v1216
      %1273 = vst [vmem:[%s257 + $0x50] sm:$0xf] %v1217
      %1274 = vst [vmem:[%s257 + $0x54] sm:$0x7] %v1218
      %1275 = vst [vmem:[%s257 + $0x58] sm:$0xf] %v1219
      %1276 = vst [vmem:[%s257 + $0x5c] sm:$0x7] %v1220
      %1277 = vst [vmem:[%s257 + $0x60] sm:$0xf] %v1221
      %1278 = vst [vmem:[%s257 + $0x64] sm:$0x7] %v1222
      %1279 = vst [vmem:[%s257 + $0x68] sm:$0xf] %v1223
      %1280 = vst [vmem:[%s257 + $0x6c] sm:$0x7] %v1224
      %s1281 = smul.u32 14, %s20
      %p1282 = scmp.lt.s32.totalorder %s19, 1
      %s1283 = scalar_select %p1282, %s19, 1
      %p1284 = scmp.lt.s32.totalorder %s1281, 13
      %s1285 = scalar_select %p1284, %s1281, 13
      %p1286 = scmp.lt.s32.totalorder %s21, 0
      %s1287 = scalar_select %p1286, %s21, 0
      %s1288 = smul.addr %s1285, 2
      %s1289 = sadd.s32 %s1287, %s1288
      %s1290 = smul.addr %s1283, 28
      %s1291 = sadd.s32 %s1289, %s1290
      %s1292 = smul.addr %s1291, 4
      %s1293 = scalar_lea.vmem %s3, %s1292
      // Predicated region
      $region33: #{conv_bn_relu_pallas.1} parent=31 // pred_check
        %p1294 = pneg %p135
      $region34: #{conv_bn_relu_pallas.1} parent=31 // pred_check_branch
        %1296 = sbr.rel (%p1294) target = $region36
      $region35: #{conv_bn_relu_pallas.1} parent=31 // pred_region
        %s1297 = smul.u32 14, %s20
      $region36: #{conv_bn_relu_pallas.1} parent=31 // pred_fallthru
        _
    $region32: #{conv_bn_relu_pallas.1} parent=5 // pred_fallthru
      _
    %p1298 = scmp.le.s32.totalorder 2, %s9
    // Predicated region
    $region37: #{conv_bn_relu_pallas.1} parent=5 // pred_check
      %p1299 = pneg %p1298
    $region38: #{conv_bn_relu_pallas.1} parent=5 // pred_check_branch
      %1301 = sbr.rel (%p1299) target = $region40
    $region39: #{conv_bn_relu_pallas.1} parent=5 // pred_region
      %s1302 = ssub.s32 %s9, 2
      // Predicated region
      $region41: #{conv_bn_relu_pallas.1} parent=39 // pred_check
        %p1303 = pneg %p141
      $region42: #{conv_bn_relu_pallas.1} parent=39 // pred_check_branch
        %1305 = sbr.rel (%p1303) target = $region44
      $region43: #{conv_bn_relu_pallas.1} parent=39 // pred_region
        %s1306 = smul.u32 14, %s23
        %p1307 = scmp.lt.s32.totalorder %s22, 1
        %s1308 = scalar_select %p1307, %s22, 1
        %p1309 = scmp.lt.s32.totalorder %s1306, 13
        %s1310 = scalar_select %p1309, %s1306, 13
        %p1311 = scmp.lt.s32.totalorder %s24, 0
        %s1312 = scalar_select %p1311, %s24, 0
        %s1313 = smul.addr %s1310, 2
        %s1314 = sadd.s32 %s1312, %s1313
        %s1315 = smul.addr %s1308, 28
        %s1316 = sadd.s32 %s1314, %s1315
        %s1317 = smul.addr %s1316, 4
        %s1318 = scalar_lea.vmem %s3, %s1317
      $region44: #{conv_bn_relu_pallas.1} parent=39 // pred_fallthru
        _
    $region40: #{conv_bn_relu_pallas.1} parent=5 // pred_fallthru
      _
  $region6: #{conv_bn_relu_pallas.1} parent=0 // loop_footer
    %s13 = sadd.s32 1, %s9
  $region7: #{conv_bn_relu_pallas.1} parent=0 // loop_footer_branch
    %8 = sbr.rel target = $region3
  $region8: #{conv_bn_relu_pallas.1} parent=0 // loop_exit
    _

</llo_original>
